<compile_context>
chip_gen: v5e
topology: v5e:2x2
jax: 0.10.0
libtpu: 0.0.40
codegen_flags: <defaults>
</compile_context>

<pallas_src>
import jax
import jax.numpy as jnp
from jax.experimental import pallas as pl
from jax.experimental.pallas import tpu as pltpu


def _round_up(x, m):
    return (x + m - 1) // m * m


def med_embedding_kernel(packed_ref, med_tab_ref, unit_tab_ref, emb_out_ref):
    # packed_ref  : (1, R_tile, 4) int32  [col0=med id, col1=unit id,
    #                                      col2=dose bits (f32<->i32), col3=pad]
    #               rows ordered with M outer, BT_tile inner.
    # med_tab_ref : (Vm_pad, E_pad) f32   (vocab padded to 128; pad rows and
    #                                      the padding_idx row are zero)
    # unit_tab_ref: (Vu_pad, E_pad) f32
    # emb_out_ref : (BT_tile, E_pad) f32
    R_tile = packed_ref.shape[1]
    Vm = med_tab_ref.shape[0]
    Vu = unit_tab_ref.shape[0]
    BT_tile = emb_out_ref.shape[0]
    M = R_tile // BT_tile

    packed = packed_ref[0]                                    # (R_tile, 4) int32
    ids = packed[:, 0:1]                                      # (R_tile, 1)
    units = packed[:, 1:2]
    dose = pltpu.bitcast(packed[:, 2:3], jnp.float32)         # (R_tile, 1) f32

    # One broadcast-compare per table; dose folded into the med one-hot.
    iota_m = jax.lax.broadcasted_iota(jnp.int32, (R_tile, Vm), 1)
    iota_u = jax.lax.broadcasted_iota(jnp.int32, (R_tile, Vu), 1)
    oh_med = jnp.where(ids == iota_m, dose, 0.0)              # (R_tile, Vm) f32
    oh_unit = (units == iota_u).astype(jnp.float32)           # (R_tile, Vu) f32

    # Exactly two MXU matmuls per tile, K = 128-aligned vocab.
    med_e = jnp.dot(oh_med, med_tab_ref[...],
                    preferred_element_type=jnp.float32)        # dose * med_emb
    unit_e = jnp.dot(oh_unit, unit_tab_ref[...],
                     preferred_element_type=jnp.float32)
    contrib = med_e * unit_e                                   # (R_tile, E_pad)

    # Reduce over M with contiguous, sublane-aligned slice adds
    # (M is the outer axis of the tile, BT_tile is a multiple of 8).
    acc = contrib[0:BT_tile]
    for m in range(1, M):
        acc = acc + contrib[m * BT_tile:(m + 1) * BT_tile]
    emb_out_ref[...] = acc


def prepare_tables(med_table, unit_table):
    """One-time (init-time) padding of the embedding tables to (128k, 128k) f32."""
    Vm, E = med_table.shape
    Vu, Eu = unit_table.shape
    # TODO(synk): only the e_dim_units=True branch (Eu == E) is implemented;
    # the Eu == 1 branch needs a lane-broadcast of the unit scalar instead.
    assert Eu == E, "kernel implements the e_dim_units=True configuration"
    Vm_pad = _round_up(Vm, 128)
    Vu_pad = _round_up(Vu, 128)
    E_pad = _round_up(E, 128)
    med_tab_p = jnp.pad(med_table.astype(jnp.float32),
                        ((0, Vm_pad - Vm), (0, E_pad - E)))
    unit_tab_p = jnp.pad(unit_table.astype(jnp.float32),
                         ((0, Vu_pad - Vu), (0, E_pad - E)))
    return med_tab_p, unit_tab_p


def _pack_inputs(medication_ids, dose, units, BT_tile, BT_pad):
    """Pack ids/units/dose into one (G, M*BT_tile, 4) int32 array, M outer per tile."""
    B, T, M = medication_ids.shape
    BT = B * T
    G = BT_pad // BT_tile

    def to_m_bt(x, dtype):
        x2 = x.reshape(BT, M).T.astype(dtype)                  # (M, BT)
        return jnp.pad(x2, ((0, 0), (0, BT_pad - BT)))         # pad rows -> 0

    ids = to_m_bt(medication_ids, jnp.int32)
    un = to_m_bt(units, jnp.int32)
    ds = jax.lax.bitcast_convert_type(to_m_bt(dose, jnp.float32), jnp.int32)
    zero = jnp.zeros_like(ids)
    packed = jnp.stack([ids, un, ds, zero], axis=-1)           # (M, BT_pad, 4)
    # Pre-tile in the wrapper so each kernel block is one contiguous slab with
    # M outer: (M, BT_pad, 4) -> (G, M*BT_tile, 4).
    packed = packed.reshape(M, G, BT_tile, 4).transpose(1, 0, 2, 3)
    return packed.reshape(G, M * BT_tile, 4)


def med_embedding_forward(medication_ids, dose, units, med_tab_p, unit_tab_p,
                          w, b, *, e_dim, bt_tile=512):
    B, T, M = medication_ids.shape
    BT = B * T
    BT_tile = min(bt_tile, _round_up(BT, 8))                   # sublane-aligned tile
    BT_pad = _round_up(BT, BT_tile)
    G = BT_pad // BT_tile
    R_tile = M * BT_tile
    Vm_pad, E_pad = med_tab_p.shape
    Vu_pad, _ = unit_tab_p.shape

    packed = _pack_inputs(medication_ids, dose, units, BT_tile, BT_pad)

    emb_pad = pl.pallas_call(
        med_embedding_kernel,
        out_shape=jax.ShapeDtypeStruct((BT_pad, E_pad), jnp.float32),
        grid_spec=pltpu.PrefetchScalarGridSpec(
            num_scalar_prefetch=0,
            grid=(G,),
            in_specs=[
                pl.BlockSpec((1, R_tile, 4), lambda j: (j, 0, 0)),   # packed ids/units/dose
                pl.BlockSpec((Vm_pad, E_pad), lambda j: (0, 0)),     # med table (resident)
                pl.BlockSpec((Vu_pad, E_pad), lambda j: (0, 0)),     # unit table (resident)
            ],
            out_specs=pl.BlockSpec((BT_tile, E_pad), lambda j: (j, 0)),
        ),
        compiler_params=pltpu.CompilerParams(
            dimension_semantics=("parallel",),        # shards BT tiles across TCs on v7x
            vmem_limit_bytes=48 * 1024 * 1024),       # explicit budget (v7x: 64 MiB/TC)
    )(packed, med_tab_p, unit_tab_p)

    emb = emb_pad[:BT, :e_dim].reshape(B, T, e_dim)            # med_combined_embed
    # Tiny linear head + sigmoid in the wrapper (~B*E FLOPs; XLA handles it).
    pooled = emb.sum(axis=1)                                   # (B, E)
    pred = jax.nn.sigmoid(pooled @ w + b.reshape(1, -1))       # (B, 1)
    return emb, pred


if __name__ == "__main__":
    # Module hyper-params (e_dim_units=True branch => unit embed dim == med embed dim)
    B, T, M = 2, 8, 4
    v_med_ids, v_units = 10, 5
    e_dim_med_ids = 32
    e_dim_units = e_dim_med_ids
    p_idx_med_ids, p_idx_units = 0, 0

    key = jax.random.PRNGKey(0)
    k1, k2, k3, k4, k5, k6, k7 = jax.random.split(key, 7)

    med_table = jax.random.normal(k1, (v_med_ids + 1, e_dim_med_ids), jnp.float32)
    med_table = med_table.at[p_idx_med_ids].set(0.0)   # nn.Embedding padding_idx row = 0
    unit_table = jax.random.normal(k2, (v_units + 1, e_dim_units), jnp.float32)
    unit_table = unit_table.at[p_idx_units].set(0.0)
    w = jax.random.normal(k3, (e_dim_med_ids, 1), jnp.float32) * 0.1
    b = jax.random.normal(k4, (1,), jnp.float32) * 0.1

    medication_ids = jax.random.randint(k5, (B, T, M), 0, v_med_ids + 1, jnp.int32)
    units = jax.random.randint(k6, (B, T, M), 0, v_units + 1, jnp.int32)
    dose = jax.random.uniform(k7, (B, T, M), jnp.float32)

    # One-time (init-time) table preparation, hoisted out of the forward call.
    med_tab_p, unit_tab_p = prepare_tables(med_table, unit_table)

    emb, pred = med_embedding_forward(medication_ids, dose, units,
                                      med_tab_p, unit_tab_p, w, b,
                                      e_dim=e_dim_med_ids)
    jax.block_until_ready((emb, pred))

    # Pure-JAX reference of the PyTorch forward
    ue = unit_table[units]                       # (B,T,M,Eu)
    me = med_table[medication_ids]               # (B,T,M,E)
    comb = ue * dose[..., None] * me
    ref_emb = comb.sum(axis=2)                   # (B,T,E)
    ref_pred = jax.nn.sigmoid(ref_emb.sum(axis=1) @ w + b.reshape(1, -1))  # (B,1)

    assert emb.shape == (B, T, e_dim_med_ids) and pred.shape == (B, 1)
    assert jnp.allclose(emb, ref_emb, atol=1e-4, rtol=1e-4)
    assert jnp.allclose(pred, ref_pred, atol=1e-5, rtol=1e-5)
    print("KERNEL_OK")
</pallas_src>

<mosaic_0001>
module attributes {stable_mosaic.version = 11 : i64} {
  func.func @med_embedding_kernel(%arg0: i32, %arg1: memref<1x64x4xi32, #tpu.memory_space<vmem>>, %arg2: memref<128x128xf32, #tpu.memory_space<vmem>>, %arg3: memref<128x128xf32, #tpu.memory_space<vmem>>, %arg4: memref<16x128xf32, #tpu.memory_space<vmem>>) attributes {dimension_semantics = [#tpu.dimension_semantics<parallel>], iteration_bounds = array<i64: 1>, scalar_prefetch = 0 : i64, scratch_operands = 0 : i64, tpu.core_type = #tpu.core_type<tc>, window_params = [{transform_indices = @transform_0, window_bounds = array<i64: 1, 64, 4>}, {pipeline_mode = #tpu.pipeline_mode<synchronous>, transform_indices = @transform_1, window_bounds = array<i64: 128, 128>}, {pipeline_mode = #tpu.pipeline_mode<synchronous>, transform_indices = @transform_2, window_bounds = array<i64: 128, 128>}, {transform_indices = @transform_3, window_bounds = array<i64: 16, 128>}]} {
    %c0 = arith.constant 0 : index
    %c0_0 = arith.constant 0 : index
    %c0_1 = arith.constant 0 : index
    %0 = vector.load %arg1[%c0, %c0_0, %c0_1] : memref<1x64x4xi32, #tpu.memory_space<vmem>>, vector<1x64x4xi32>
    %1 = vector.shape_cast %0 : vector<1x64x4xi32> to vector<64x4xi32>
    %2 = vector.extract_strided_slice %1 {offsets = [0, 0], sizes = [64, 1], strides = [1, 1]} : vector<64x4xi32> to vector<64x1xi32>
    %3 = vector.extract_strided_slice %1 {offsets = [0, 1], sizes = [64, 1], strides = [1, 1]} : vector<64x4xi32> to vector<64x1xi32>
    %4 = vector.extract_strided_slice %1 {offsets = [0, 2], sizes = [64, 1], strides = [1, 1]} : vector<64x4xi32> to vector<64x1xi32>
    %5 = tpu.bitcast %4 : vector<64x1xi32> -> vector<64x1xf32>
    %6 = tpu.iota {dimensions = array<i32: 1>} : vector<64x128xi32>
    %7 = tpu.iota {dimensions = array<i32: 1>} : vector<64x128xi32>
    %8 = vector.broadcast %2 : vector<64x1xi32> to vector<64x128xi32>
    %9 = arith.cmpi eq, %8, %6 : vector<64x128xi32>
    %cst = arith.constant 0.000000e+00 : f32
    %10 = vector.shape_cast %5 : vector<64x1xf32> to vector<64x1xf32>
    %11 = vector.broadcast %10 : vector<64x1xf32> to vector<64x128xf32>
    %12 = vector.broadcast %cst : f32 to vector<64x128xf32>
    %13 = arith.select %9, %11, %12 : vector<64x128xi1>, vector<64x128xf32>
    %14 = vector.broadcast %3 : vector<64x1xi32> to vector<64x128xi32>
    %15 = arith.cmpi eq, %14, %7 : vector<64x128xi32>
    %16 = arith.extui %15 : vector<64x128xi1> to vector<64x128xi32>
    %17 = arith.sitofp %16 : vector<64x128xi32> to vector<64x128xf32>
    %c0_2 = arith.constant 0 : index
    %c0_3 = arith.constant 0 : index
    %18 = vector.load %arg2[%c0_2, %c0_3] : memref<128x128xf32, #tpu.memory_space<vmem>>, vector<128x128xf32>
    %cst_4 = arith.constant dense<0.000000e+00> : vector<64x128xf32>
    %19 = tpu.matmul %13, %18, %cst_4 {dimension_numbers = #tpu.dot_dimension_numbers<[1], [0], [0], [1], [0, 0, 1, 1], [], []>} : vector<64x128xf32>, vector<128x128xf32>, vector<64x128xf32> -> vector<64x128xf32>
    %c0_5 = arith.constant 0 : index
    %c0_6 = arith.constant 0 : index
    %20 = vector.load %arg3[%c0_5, %c0_6] : memref<128x128xf32, #tpu.memory_space<vmem>>, vector<128x128xf32>
    %cst_7 = arith.constant dense<0.000000e+00> : vector<64x128xf32>
    %21 = tpu.matmul %17, %20, %cst_7 {dimension_numbers = #tpu.dot_dimension_numbers<[1], [0], [0], [1], [0, 0, 1, 1], [], []>} : vector<64x128xf32>, vector<128x128xf32>, vector<64x128xf32> -> vector<64x128xf32>
    %22 = arith.mulf %19, %21 : vector<64x128xf32>
    %23 = vector.extract_strided_slice %22 {offsets = [0, 0], sizes = [16, 128], strides = [1, 1]} : vector<64x128xf32> to vector<16x128xf32>
    %24 = vector.extract_strided_slice %22 {offsets = [16, 0], sizes = [16, 128], strides = [1, 1]} : vector<64x128xf32> to vector<16x128xf32>
    %25 = arith.addf %23, %24 : vector<16x128xf32>
    %26 = vector.extract_strided_slice %22 {offsets = [32, 0], sizes = [16, 128], strides = [1, 1]} : vector<64x128xf32> to vector<16x128xf32>
    %27 = arith.addf %25, %26 : vector<16x128xf32>
    %28 = vector.extract_strided_slice %22 {offsets = [48, 0], sizes = [16, 128], strides = [1, 1]} : vector<64x128xf32> to vector<16x128xf32>
    %29 = arith.addf %27, %28 : vector<16x128xf32>
    %c0_8 = arith.constant 0 : index
    %c0_9 = arith.constant 0 : index
    %30 = vector.load %arg4[%c0_8, %c0_9] : memref<16x128xf32, #tpu.memory_space<vmem>>, vector<16x128xf32>
    tpu.vector_store %arg4[%c0_8, %c0_9], %29 {strides = array<i32>} : memref<16x128xf32, #tpu.memory_space<vmem>>, vector<16x128xf32>,
    return
  }
  func.func @transform_0(%arg0: i32) -> (i32, i32, i32) {
    %c0_i32 = arith.constant 0 : i32
    %c0_i32_0 = arith.constant 0 : i32
    %c0_i32_1 = arith.constant 0 : i32
    return %arg0, %c0_i32, %c0_i32_0 : i32, i32, i32
  }
  func.func @transform_1(%arg0: i32) -> (i32, i32) {
    %c0_i32 = arith.constant 0 : i32
    %c0_i32_0 = arith.constant 0 : i32
    %c0_i32_1 = arith.constant 0 : i32
    return %c0_i32, %c0_i32_0 : i32, i32
  }
  func.func @transform_2(%arg0: i32) -> (i32, i32) {
    %c0_i32 = arith.constant 0 : i32
    %c0_i32_0 = arith.constant 0 : i32
    %c0_i32_1 = arith.constant 0 : i32
    return %c0_i32, %c0_i32_0 : i32, i32
  }
  func.func @transform_3(%arg0: i32) -> (i32, i32) {
    %c0_i32 = arith.constant 0 : i32
    %c0_i32_0 = arith.constant 0 : i32
    return %arg0, %c0_i32 : i32, i32
  }
}

</mosaic_0001>

<llo_original>
// kernel: tpu_custom_call.1
$region0: #{tpu_custom_call.1}
  #allocation0 [shape = 'u32[]', space=smem, size = 0x4, offset = 0x4, fixed_abs, tag = 'smem constant byte address 0x4 - core index']
  #allocation1 [shape = 'u32[72,128]{1,0:T(1,128)}', space=vmem, size = 0x9000, scoped, tag = 'internal scratch']
  %s0 = inlined_call_operand.vmem [shape: s32[1,64,4], index: 0, kind: input, shape index: {}]
  %s1 = inlined_call_operand.hbm [shape: f32[128,128], index: 1, kind: input, shape index: {}]
  %s2 = inlined_call_operand.hbm [shape: f32[128,128], index: 2, kind: input, shape index: {}]
  %s3 = inlined_call_operand.hbm [shape: f32[16,128], index: 3, kind: output, shape index: {}]
  %s4 = sld [smem:[#allocation0]]
  $region30: #{tpu_custom_call.1} parent=0
    _
  %s6 = ssub.s32 1, %s4
  %s7 = scalar_select 0, %s6, %s4
  $region1: #{tpu_custom_call.1} parent=0
    #allocation2 [shape = 'u8[65536]{0}', space=vmem, size = 0x10000, scoped, tag = 'input window, operand 1, single buffered']
    #allocation3 [shape = 's32[1]{0}', space=sflag, size = 0x4, scoped, tag = 'scoped memory for tpu_custom_call.1']
    #allocation4 [shape = 's32[1]{0}', space=sflag, size = 0x4, scoped, tag = 'scoped memory for tpu_custom_call.1']
    #allocation5 [shape = 'u8[65536]{0}', space=vmem, size = 0x10000, scoped, tag = 'input window, operand 2, single buffered']
    #allocation6 [shape = 's32[1]{0}', space=sflag, size = 0x4, scoped, tag = 'scoped memory for tpu_custom_call.1']
    #allocation7 [shape = 'u8[8192]{0}', space=vmem, size = 0x2000, scoped, tag = 'output window, operand 0, single buffered']
    %8 = vsyncpa [#allocation3], 0
    %9 = vsyncpa [#allocation6], 0
    %10 = vsyncpa [#allocation4], 0
    // Predicated region
    $region2: #{tpu_custom_call.1} parent=1 // pred_check
      _
    $region3: #{tpu_custom_call.1} parent=1 // pred_check_branch
      %12 = sbr.rel (0) target = $region5
    $region4: #{tpu_custom_call.1} parent=1 // pred_region
      _
    $region5: #{tpu_custom_call.1} parent=1 // pred_fallthru
      _
    // Predicated region
    $region6: #{tpu_custom_call.1} parent=1 // pred_check
      _
    $region7: #{tpu_custom_call.1} parent=1 // pred_check_branch
      %14 = sbr.rel (0) target = $region9
    $region8: #{tpu_custom_call.1} parent=1 // pred_region
      %16 = vsyncadd [#allocation3], 0
      %s17 = sshll.u32 %s1, 4
      %s18 = int_to_ptr.hbm [resolvable:$true] %s17
      %s19 = sshll.u32 [#allocation2], 4
      %s20 = int_to_ptr.vmem [resolvable:$true] %s19
      %25 = dma.hbm_to_vmem [thread:$0]  %s18, 2048, %s20, [#allocation3], 128, 128, 8
    $region9: #{tpu_custom_call.1} parent=1 // pred_fallthru
      _
    // Predicated region
    $region10: #{tpu_custom_call.1} parent=1 // pred_check
      _
    $region11: #{tpu_custom_call.1} parent=1 // pred_check_branch
      %27 = sbr.rel (0) target = $region13
    $region12: #{tpu_custom_call.1} parent=1 // pred_region
      %29 = vsyncadd [#allocation6], 0
      %s30 = sshll.u32 %s2, 4
      %s31 = int_to_ptr.hbm [resolvable:$true] %s30
      %s32 = sshll.u32 [#allocation5], 4
      %s33 = int_to_ptr.vmem [resolvable:$true] %s32
      %38 = dma.hbm_to_vmem [thread:$0]  %s31, 2048, %s33, [#allocation6], 128, 128, 8
    $region13: #{tpu_custom_call.1} parent=1 // pred_fallthru
      _
    // Predicated region
    $region14: #{tpu_custom_call.1} parent=1 // pred_check
      _
    $region15: #{tpu_custom_call.1} parent=1 // pred_check_branch
      %40 = sbr.rel (0) target = $region17
    $region16: #{tpu_custom_call.1} parent=1 // pred_region
      %42 = dma.done [#allocation3], 2048
    $region17: #{tpu_custom_call.1} parent=1 // pred_fallthru
      _
    // Predicated region
    $region18: #{tpu_custom_call.1} parent=1 // pred_check
      _
    $region19: #{tpu_custom_call.1} parent=1 // pred_check_branch
      %44 = sbr.rel (0) target = $region21
    $region20: #{tpu_custom_call.1} parent=1 // pred_region
      %46 = dma.done [#allocation6], 2048
    $region21: #{tpu_custom_call.1} parent=1 // pred_fallthru
      _
    %v47 = vld [vmem:[%s0] sm:$0xff]
    %v48 = vld [vmem:[%s0 + $0x8] sm:$0xff]
    %v49 = vld [vmem:[%s0 + $0x10] sm:$0xff]
    %v50 = vld [vmem:[%s0 + $0x18] sm:$0xff]
    %v51 = vld [vmem:[%s0 + $0x20] sm:$0xff]
    %v52 = vld [vmem:[%s0 + $0x28] sm:$0xff]
    %v53 = vld [vmem:[%s0 + $0x30] sm:$0xff]
    %v54 = vld [vmem:[%s0 + $0x38] sm:$0xff]
    %v55 = vlaneseq
    %v56 = vand.u32 %v55, 127
    %57 = vset.pattern.permute.xlu0 0
    %58 = vperm.xlu0 %57, %v47
    %v59 = vpop.permute.xlu0 %58
    %60 = vset.pattern.permute.xlu0 0
    %61 = vperm.xlu0 %60, %v48
    %v62 = vpop.permute.xlu0 %61
    %63 = vset.pattern.permute.xlu0 0
    %64 = vperm.xlu0 %63, %v49
    %v65 = vpop.permute.xlu0 %64
    %66 = vset.pattern.permute.xlu0 0
    %67 = vperm.xlu0 %66, %v50
    %v68 = vpop.permute.xlu0 %67
    %69 = vset.pattern.permute.xlu0 0
    %70 = vperm.xlu0 %69, %v51
    %v71 = vpop.permute.xlu0 %70
    %72 = vset.pattern.permute.xlu0 0
    %73 = vperm.xlu0 %72, %v52
    %v74 = vpop.permute.xlu0 %73
    %75 = vset.pattern.permute.xlu0 0
    %76 = vperm.xlu0 %75, %v53
    %v77 = vpop.permute.xlu0 %76
    %78 = vset.pattern.permute.xlu0 0
    %79 = vperm.xlu0 %78, %v54
    %v80 = vpop.permute.xlu0 %79
    %vm81 = vcmp.eq.s32.totalorder %v59, %v56
    %vm82 = vcmp.eq.s32.totalorder %v62, %v56
    %vm83 = vcmp.eq.s32.totalorder %v65, %v56
    %vm84 = vcmp.eq.s32.totalorder %v68, %v56
    %vm85 = vcmp.eq.s32.totalorder %v71, %v56
    %vm86 = vcmp.eq.s32.totalorder %v74, %v56
    %vm87 = vcmp.eq.s32.totalorder %v77, %v56
    %vm88 = vcmp.eq.s32.totalorder %v80, %v56
    %89 = vset.pattern.permute.xlu0 2
    %90 = vperm.xlu0 %89, %v47
    %v91 = vpop.permute.xlu0 %90
    %93 = vset.pattern.permute.xlu0 2
    %94 = vperm.xlu0 %93, %v48
    %v95 = vpop.permute.xlu0 %94
    %97 = vset.pattern.permute.xlu0 2
    %98 = vperm.xlu0 %97, %v49
    %v99 = vpop.permute.xlu0 %98
    %101 = vset.pattern.permute.xlu0 2
    %102 = vperm.xlu0 %101, %v50
    %v103 = vpop.permute.xlu0 %102
    %105 = vset.pattern.permute.xlu0 2
    %106 = vperm.xlu0 %105, %v51
    %v107 = vpop.permute.xlu0 %106
    %109 = vset.pattern.permute.xlu0 2
    %110 = vperm.xlu0 %109, %v52
    %v111 = vpop.permute.xlu0 %110
    %113 = vset.pattern.permute.xlu0 2
    %114 = vperm.xlu0 %113, %v53
    %v115 = vpop.permute.xlu0 %114
    %117 = vset.pattern.permute.xlu0 2
    %118 = vperm.xlu0 %117, %v54
    %v119 = vpop.permute.xlu0 %118
    %v121 = vsel %vm81, %v91, 0.0
    %v122 = vsel %vm82, %v95, 0.0
    %v123 = vsel %vm83, %v99, 0.0
    %v124 = vsel %vm84, %v103, 0.0
    %v125 = vsel %vm85, %v107, 0.0
    %v126 = vsel %vm86, %v111, 0.0
    %v127 = vsel %vm87, %v115, 0.0
    %v128 = vsel %vm88, %v119, 0.0
    %129 = vset.pattern.permute.xlu0 1
    %130 = vperm.xlu0 %129, %v47
    %v131 = vpop.permute.xlu0 %130
    %132 = vset.pattern.permute.xlu0 1
    %133 = vperm.xlu0 %132, %v48
    %v134 = vpop.permute.xlu0 %133
    %135 = vset.pattern.permute.xlu0 1
    %136 = vperm.xlu0 %135, %v49
    %v137 = vpop.permute.xlu0 %136
    %138 = vset.pattern.permute.xlu0 1
    %139 = vperm.xlu0 %138, %v50
    %v140 = vpop.permute.xlu0 %139
    %141 = vset.pattern.permute.xlu0 1
    %142 = vperm.xlu0 %141, %v51
    %v143 = vpop.permute.xlu0 %142
    %144 = vset.pattern.permute.xlu0 1
    %145 = vperm.xlu0 %144, %v52
    %v146 = vpop.permute.xlu0 %145
    %147 = vset.pattern.permute.xlu0 1
    %148 = vperm.xlu0 %147, %v53
    %v149 = vpop.permute.xlu0 %148
    %150 = vset.pattern.permute.xlu0 1
    %151 = vperm.xlu0 %150, %v54
    %v152 = vpop.permute.xlu0 %151
    %vm153 = vcmp.eq.s32.totalorder %v131, %v56
    %vm154 = vcmp.eq.s32.totalorder %v134, %v56
    %vm155 = vcmp.eq.s32.totalorder %v137, %v56
    %vm156 = vcmp.eq.s32.totalorder %v140, %v56
    %vm157 = vcmp.eq.s32.totalorder %v143, %v56
    %vm158 = vcmp.eq.s32.totalorder %v146, %v56
    %vm159 = vcmp.eq.s32.totalorder %v149, %v56
    %vm160 = vcmp.eq.s32.totalorder %v152, %v56
    %v161 = vsel %vm153, 1, 0
    %v162 = vsel %vm154, 1, 0
    %v163 = vsel %vm155, 1, 0
    %v164 = vsel %vm156, 1, 0
    %v165 = vsel %vm157, 1, 0
    %v166 = vsel %vm158, 1, 0
    %v167 = vsel %vm159, 1, 0
    %v168 = vsel %vm160, 1, 0
    %v169 = vcvt.s32.f32 %v161
    %v170 = vcvt.s32.f32 %v162
    %v171 = vcvt.s32.f32 %v163
    %v172 = vcvt.s32.f32 %v164
    %v173 = vcvt.s32.f32 %v165
    %v174 = vcvt.s32.f32 %v166
    %v175 = vcvt.s32.f32 %v167
    %v176 = vcvt.s32.f32 %v168
    %v177 = vld [vmem:[#allocation2] sm:$0xff]
    %v178 = vld [vmem:[#allocation2 + $0x8] sm:$0xff]
    %v179 = vld [vmem:[#allocation2 + $0x10] sm:$0xff]
    %v180 = vld [vmem:[#allocation2 + $0x18] sm:$0xff]
    %v181 = vld [vmem:[#allocation2 + $0x20] sm:$0xff]
    %v182 = vld [vmem:[#allocation2 + $0x28] sm:$0xff]
    %v183 = vld [vmem:[#allocation2 + $0x30] sm:$0xff]
    %v184 = vld [vmem:[#allocation2 + $0x38] sm:$0xff]
    %v185 = vld [vmem:[#allocation2 + $0x40] sm:$0xff]
    %v186 = vld [vmem:[#allocation2 + $0x48] sm:$0xff]
    %v187 = vld [vmem:[#allocation2 + $0x50] sm:$0xff]
    %v188 = vld [vmem:[#allocation2 + $0x58] sm:$0xff]
    %v189 = vld [vmem:[#allocation2 + $0x60] sm:$0xff]
    %v190 = vld [vmem:[#allocation2 + $0x68] sm:$0xff]
    %v191 = vld [vmem:[#allocation2 + $0x70] sm:$0xff]
    %v192 = vld [vmem:[#allocation2 + $0x78] sm:$0xff]
    %193 = vmatpush.msra.mxu0 %v192
    %194 = vmatpush.msra.mxu0 %v191
    %195 = vmatpush.msra.mxu0 %v190
    %196 = vmatpush.msra.mxu0 %v189
    %197 = vmatpush.msra.mxu0 %v188
    %198 = vmatpush.msra.mxu0 %v187
    %199 = vmatpush.msra.mxu0 %v186
    %200 = vmatpush.msra.mxu0 %v185
    %201 = vmatpush.msra.mxu0 %v184
    %202 = vmatpush.msra.mxu0 %v183
    %203 = vmatpush.msra.mxu0 %v182
    %204 = vmatpush.msra.mxu0 %v181
    %205 = vmatpush.msra.mxu0 %v180
    %206 = vmatpush.msra.mxu0 %v179
    %207 = vmatpush.msra.mxu0 %v178
    %208 = vmatpush.msra.mxu0 %v177
    %209 = vmatmul.f32.gmra.mxu0 %v121
    %v210 = vpop.f32.mrf.mxu0
    %v211 = vadd.f32 0.0, %v210
    %212 = vmatmul.f32.gmra.mxu0 %v122
    %v213 = vpop.f32.mrf.mxu0
    %v214 = vadd.f32 0.0, %v213
    %215 = vmatmul.f32.gmra.mxu0 %v123
    %v216 = vpop.f32.mrf.mxu0
    %v217 = vadd.f32 0.0, %v216
    %218 = vmatmul.f32.gmra.mxu0 %v124
    %v219 = vpop.f32.mrf.mxu0
    %v220 = vadd.f32 0.0, %v219
    %221 = vmatmul.f32.gmra.mxu0 %v125
    %v222 = vpop.f32.mrf.mxu0
    %v223 = vadd.f32 0.0, %v222
    %224 = vmatmul.f32.gmra.mxu0 %v126
    %v225 = vpop.f32.mrf.mxu0
    %v226 = vadd.f32 0.0, %v225
    %227 = vmatmul.f32.gmra.mxu0 %v127
    %v228 = vpop.f32.mrf.mxu0
    %v229 = vadd.f32 0.0, %v228
    %230 = vmatmul.f32.gmra.mxu0 %v128
    %v231 = vpop.f32.mrf.mxu0
    %v232 = vadd.f32 0.0, %v231
    %233 = vdwg.mxu0
    %v234 = vld [vmem:[#allocation5] sm:$0xff]
    %v235 = vld [vmem:[#allocation5 + $0x8] sm:$0xff]
    %v236 = vld [vmem:[#allocation5 + $0x10] sm:$0xff]
    %v237 = vld [vmem:[#allocation5 + $0x18] sm:$0xff]
    %v238 = vld [vmem:[#allocation5 + $0x20] sm:$0xff]
    %v239 = vld [vmem:[#allocation5 + $0x28] sm:$0xff]
    %v240 = vld [vmem:[#allocation5 + $0x30] sm:$0xff]
    %v241 = vld [vmem:[#allocation5 + $0x38] sm:$0xff]
    %v242 = vld [vmem:[#allocation5 + $0x40] sm:$0xff]
    %v243 = vld [vmem:[#allocation5 + $0x48] sm:$0xff]
    %v244 = vld [vmem:[#allocation5 + $0x50] sm:$0xff]
    %v245 = vld [vmem:[#allocation5 + $0x58] sm:$0xff]
    %v246 = vld [vmem:[#allocation5 + $0x60] sm:$0xff]
    %v247 = vld [vmem:[#allocation5 + $0x68] sm:$0xff]
    %v248 = vld [vmem:[#allocation5 + $0x70] sm:$0xff]
    %v249 = vld [vmem:[#allocation5 + $0x78] sm:$0xff]
    %250 = vmatpush.msra.mxu0 %v249
    %251 = vmatpush.msra.mxu0 %v248
    %252 = vmatpush.msra.mxu0 %v247
    %253 = vmatpush.msra.mxu0 %v246
    %254 = vmatpush.msra.mxu0 %v245
    %255 = vmatpush.msra.mxu0 %v244
    %256 = vmatpush.msra.mxu0 %v243
    %257 = vmatpush.msra.mxu0 %v242
    %258 = vmatpush.msra.mxu0 %v241
    %259 = vmatpush.msra.mxu0 %v240
    %260 = vmatpush.msra.mxu0 %v239
    %261 = vmatpush.msra.mxu0 %v238
    %262 = vmatpush.msra.mxu0 %v237
    %263 = vmatpush.msra.mxu0 %v236
    %264 = vmatpush.msra.mxu0 %v235
    %265 = vmatpush.msra.mxu0 %v234
    %266 = vmatmul.f32.gmra.mxu0 %v169
    %v267 = vpop.f32.mrf.mxu0
    %v268 = vadd.f32 0.0, %v267
    %269 = vmatmul.f32.gmra.mxu0 %v170
    %v270 = vpop.f32.mrf.mxu0
    %v271 = vadd.f32 0.0, %v270
    %272 = vmatmul.f32.gmra.mxu0 %v171
    %v273 = vpop.f32.mrf.mxu0
    %v274 = vadd.f32 0.0, %v273
    %275 = vmatmul.f32.gmra.mxu0 %v172
    %v276 = vpop.f32.mrf.mxu0
    %v277 = vadd.f32 0.0, %v276
    %278 = vmatmul.f32.gmra.mxu0 %v173
    %v279 = vpop.f32.mrf.mxu0
    %v280 = vadd.f32 0.0, %v279
    %281 = vmatmul.f32.gmra.mxu0 %v174
    %v282 = vpop.f32.mrf.mxu0
    %v283 = vadd.f32 0.0, %v282
    %284 = vmatmul.f32.gmra.mxu0 %v175
    %v285 = vpop.f32.mrf.mxu0
    %v286 = vadd.f32 0.0, %v285
    %287 = vmatmul.f32.gmra.mxu0 %v176
    %v288 = vpop.f32.mrf.mxu0
    %v289 = vadd.f32 0.0, %v288
    %290 = vdwg.mxu0
    %v291 = vmul.f32 %v211, %v268
    %v292 = vmul.f32 %v214, %v271
    %v293 = vmul.f32 %v217, %v274
    %v294 = vmul.f32 %v220, %v277
    %v295 = vmul.f32 %v223, %v280
    %v296 = vmul.f32 %v226, %v283
    %v297 = vmul.f32 %v229, %v286
    %v298 = vmul.f32 %v232, %v289
    %v299 = vadd.f32 %v291, %v293
    %v300 = vadd.f32 %v292, %v294
    %v301 = vadd.f32 %v299, %v295
    %v302 = vadd.f32 %v300, %v296
    %v303 = vadd.f32 %v301, %v297
    %v304 = vadd.f32 %v302, %v298
    %305 = vst [vmem:[#allocation7] sm:$0xff] %v303
    %306 = vst [vmem:[#allocation7 + $0x8] sm:$0xff] %v304
    // Predicated region
    $region22: #{tpu_custom_call.1} parent=1 // pred_check
      _
    $region23: #{tpu_custom_call.1} parent=1 // pred_check_branch
      %308 = sbr.rel (0) target = $region25
    $region24: #{tpu_custom_call.1} parent=1 // pred_region
      %310 = vsyncadd [#allocation4], 0
      %s311 = sshll.u32 [#allocation7], 4
      %s312 = int_to_ptr.vmem [resolvable:$true] %s311
      %s313 = sshll.u32 %s3, 4
      %s314 = int_to_ptr.hbm [resolvable:$true] %s313
      %319 = dma.vmem_to_hbm [thread:$0]  %s312, 256, %s314, [#allocation4], 128, 128, 8
    $region25: #{tpu_custom_call.1} parent=1 // pred_fallthru
      _
    // Predicated region
    $region26: #{tpu_custom_call.1} parent=1 // pred_check
      _
    $region27: #{tpu_custom_call.1} parent=1 // pred_check_branch
      %321 = sbr.rel (0) target = $region29
    $region28: #{tpu_custom_call.1} parent=1 // pred_region
      %323 = dma.done [#allocation4], 256
    $region29: #{tpu_custom_call.1} parent=1 // pred_fallthru
      _
    %324 = vsyncpa [#allocation3], 1
    %325 = vsyncpa [#allocation6], 1
    %326 = vsyncpa [#allocation4], 1

</llo_original>
